<compile_context>
chip_gen: v5e
topology: v5e:2x2
jax: 0.10.0
libtpu: 0.0.40
codegen_flags: <defaults>
</compile_context>

<pallas_src>
import functools
import math

import numpy as np
import jax
import jax.numpy as jnp
from jax.experimental import pallas as pl
from jax.experimental.pallas import tpu as pltpu

EPS = 1e-5


# ----------------------------------------------------------------------------- config
@functools.lru_cache(maxsize=1)
def _tpu_config():
    """Per-generation tile byte target, scoped VMEM limit and row-axis semantics."""
    kind = ""
    try:
        kind = jax.devices()[0].device_kind.lower()
    except Exception:
        pass
    vmem_cap = None
    try:
        vmem_cap = int(pltpu.get_tpu_info().vmem_capacity_bytes)
    except Exception:
        pass
    is_v7 = ("v7" in kind) or ("7x" in kind) or (vmem_cap is not None and vmem_cap <= (80 << 20))
    if is_v7:
        tile_target = 4 << 20       # input-dtype bytes of x per grid step
        vmem_limit = 40 << 20       # headroom on v7x's 64 MiB physical VMEM
        row_sem = getattr(pltpu, "CORE_PARALLEL", "parallel")   # engage both TCs
    else:
        tile_target = 8 << 20       # v5e/v6e: 128 MiB physical VMEM -> bigger tiles
        vmem_limit = 64 << 20
        row_sem = "parallel"
    return tile_target, vmem_limit, row_sem


def _sublane(dtype):
    return {4: 8, 2: 16, 1: 32}.get(jnp.dtype(dtype).itemsize, 8)


def _pick_tile_rows(rows, width, dtype, tile_target, vmem_limit):
    """Largest sublane-aligned row tile within the byte target and the VMEM budget."""
    item = jnp.dtype(dtype).itemsize
    sub = _sublane(dtype)
    # Per row of the tile: double-buffered input + output, plus ~4 full-width f32 temps.
    per_row = width * (2 * item + 2 * item + 4 * 4)
    budget = max(per_row * sub, vmem_limit - (4 << 20))
    tr = tile_target // max(1, width * item)
    tr = min(tr, budget // per_row)
    tr = max(sub, (tr // sub) * sub)
    return min(tr, rows)


# ----------------------------------------------------------------------------- kernels
def _ln_packed_kernel(x_ref, p_ref, segsum_ref, scaleb_ref, shiftb_ref, o_ref, *, inv_d, eps):
    """Lane-packed LayerNorm: each 128-wide row holds G independent segments.

    x_ref/o_ref: (T, 128).  p_ref: (128,128) 0/1 block-diagonal "sum & broadcast".
    segsum_ref: (128, G) 0/1 per-segment sum.  scaleb_ref: (G, 128) broadcast matrix
    with `scale` folded in (zeros on padded lanes).  shiftb_ref: (1, 128).
    Constants are resident across the grid (constant index_map) -> never re-DMA'd.
    """
    x = x_ref[...]                                                    # native dtype -> MXU ingest
    # Segment sums broadcast back to all lanes: one full 128x128-shaped matmul.
    sums = jnp.dot(x, p_ref[...], preferred_element_type=jnp.float32)            # (T,128) f32
    centered = x - sums * inv_d                                                   # promotes to f32
    var_seg = jnp.dot(centered * centered, segsum_ref[...],
                      preferred_element_type=jnp.float32) * inv_d                 # (T,G)
    rstd_seg = jax.lax.rsqrt(var_seg + eps)                                       # (T,G) on EUP
    rstd_scale = jnp.dot(rstd_seg, scaleb_ref[...],
                         preferred_element_type=jnp.float32)                      # (T,128) rstd*scale
    o_ref[...] = (centered * rstd_scale + shiftb_ref[...]).astype(o_ref.dtype)


def _ln_plain_kernel(x_ref, scale_ref, shift_ref, o_ref, *, eps):
    """One LayerNorm segment per row, normalized over the whole (>=128) lane axis."""
    x = x_ref[...].astype(jnp.float32)
    mean = jnp.mean(x, axis=-1, keepdims=True)
    centered = x - mean
    var = jnp.mean(centered * centered, axis=-1, keepdims=True)
    rstd = jax.lax.rsqrt(var + eps)
    o_ref[...] = (centered * rstd * scale_ref[...] + shift_ref[...]).astype(o_ref.dtype)


def _ln_stats_kernel(x_ref, mean_ref, rstd_ref, sum_sc, sq_sc, *, d, eps):
    """Pass 1 of the large-D fallback: accumulate sum / sum-of-squares over lane chunks."""
    k = pl.program_id(1)

    @pl.when(k == 0)
    def _():
        sum_sc[...] = jnp.zeros_like(sum_sc)
        sq_sc[...] = jnp.zeros_like(sq_sc)

    x = x_ref[...].astype(jnp.float32)
    dc = x.shape[-1]
    if d % dc != 0:  # mask the ragged last lane chunk
        col = jax.lax.broadcasted_iota(jnp.int32, x.shape, 1) + k * dc
        x = jnp.where(col < d, x, 0.0)
    sum_sc[...] += jnp.sum(x, axis=-1, keepdims=True)
    sq_sc[...] += jnp.sum(x * x, axis=-1, keepdims=True)

    @pl.when(k == pl.num_programs(1) - 1)
    def _():
        inv_d = 1.0 / d
        mean = sum_sc[...] * inv_d
        var = jnp.maximum(sq_sc[...] * inv_d - mean * mean, 0.0)
        mean_ref[...] = mean
        rstd_ref[...] = jax.lax.rsqrt(var + eps)


def _ln_apply_kernel(x_ref, mean_ref, rstd_ref, scale_ref, shift_ref, o_ref):
    """Pass 2 of the large-D fallback: normalize each lane chunk with per-row stats."""
    x = x_ref[...].astype(jnp.float32)
    y = (x - mean_ref[...]) * rstd_ref[...] * scale_ref[...] + shift_ref[...]
    o_ref[...] = y.astype(o_ref.dtype)


# ----------------------------------------------------------------------------- wrappers
def _layer_norm_packed(x2d, scale, shift, tile_target, vmem_limit, row_sem):
    """Lane-dense path for D < 128: pack G segments per 128-wide lane row."""
    rows, d = x2d.shape
    d_pad = int(pl.next_power_of_2(d))          # smallest divisor of 128 that is >= d
    g = 128 // d_pad
    rows_p = pl.cdiv(rows, g)
    needs_pad = (d_pad != d) or (rows % g != 0)
    if needs_pad:
        # One-time pad so every lane row holds g whole segments; padded rows/lanes
        # are zeros and are sliced off after the kernel.
        xp = jnp.pad(x2d, ((0, rows_p * g - rows), (0, d_pad - d)))
    else:
        xp = x2d
    xp = xp.reshape(rows_p, 128)

    # --- resident reduction constants, built once in the wrapper (hoisted out of the body)
    lane = np.arange(128)
    seg = lane // d_pad
    valid = (lane % d_pad) < d
    p_np = ((seg[:, None] == seg[None, :]) & valid[:, None]).astype(np.float32)        # (128,128)
    segsum_np = ((seg[:, None] == np.arange(g)[None, :]) & valid[:, None]).astype(np.float32)  # (128,g)
    bmask_np = ((np.arange(g)[:, None] == seg[None, :]) & valid[None, :]).astype(np.float32)   # (g,128)

    mm_dtype = jnp.bfloat16 if x2d.dtype == jnp.bfloat16 else jnp.float32
    p_bcast = jnp.asarray(p_np, dtype=mm_dtype)            # 0/1: exact even in bf16
    seg_sum = jnp.asarray(segsum_np)
    scale_pad = jnp.pad(scale.astype(jnp.float32).reshape(-1), (0, d_pad - d))
    scale_bcast = jnp.asarray(bmask_np) * jnp.tile(scale_pad, g)[None, :]               # (g,128)
    shift_pad = jnp.pad(shift.astype(jnp.float32).reshape(-1), (0, d_pad - d))
    shift_bcast = jnp.tile(shift_pad, g).reshape(1, 128)

    tile_rows = _pick_tile_rows(rows_p, 128, x2d.dtype, tile_target, vmem_limit)
    n_r = pl.cdiv(rows_p, tile_rows)
    sem = (row_sem if n_r >= 2 else "arbitrary",)
    kernel = functools.partial(_ln_packed_kernel, inv_d=1.0 / d, eps=EPS)

    out = pl.pallas_call(
        kernel,
        out_shape=jax.ShapeDtypeStruct((rows_p, 128), x2d.dtype),
        grid_spec=pltpu.PrefetchScalarGridSpec(
            num_scalar_prefetch=0,
            grid=(n_r,),
            in_specs=[
                pl.BlockSpec((tile_rows, 128), lambda i: (i, 0)),
                pl.BlockSpec((128, 128), lambda i: (0, 0)),   # resident constants below
                pl.BlockSpec((128, g), lambda i: (0, 0)),
                pl.BlockSpec((g, 128), lambda i: (0, 0)),
                pl.BlockSpec((1, 128), lambda i: (0, 0)),
            ],
            out_specs=pl.BlockSpec((tile_rows, 128), lambda i: (i, 0)),
        ),
        compiler_params=pltpu.CompilerParams(
            dimension_semantics=sem, vmem_limit_bytes=vmem_limit),
    )(xp, p_bcast, seg_sum, scale_bcast, shift_bcast)

    if needs_pad:
        return out.reshape(rows_p * g, d_pad)[:rows, :d]
    return out.reshape(rows, d)


def _layer_norm_plain(x2d, scale, shift, tile_target, vmem_limit, row_sem):
    """Single-pass path for D >= 128 that fits a (tile_rows, D) block in VMEM."""
    rows, d = x2d.shape
    tile_rows = _pick_tile_rows(rows, d, x2d.dtype, tile_target, vmem_limit)
    n_r = pl.cdiv(rows, tile_rows)
    sem = (row_sem if n_r >= 2 else "arbitrary",)
    scale2 = scale.astype(jnp.float32).reshape(1, d)
    shift2 = shift.astype(jnp.float32).reshape(1, d)
    return pl.pallas_call(
        functools.partial(_ln_plain_kernel, eps=EPS),
        out_shape=jax.ShapeDtypeStruct((rows, d), x2d.dtype),
        grid_spec=pltpu.PrefetchScalarGridSpec(
            num_scalar_prefetch=0,
            grid=(n_r,),
            in_specs=[
                pl.BlockSpec((tile_rows, d), lambda i: (i, 0)),
                pl.BlockSpec((1, d), lambda i: (0, 0)),       # resident scale
                pl.BlockSpec((1, d), lambda i: (0, 0)),       # resident shift
            ],
            out_specs=pl.BlockSpec((tile_rows, d), lambda i: (i, 0)),
        ),
        compiler_params=pltpu.CompilerParams(
            dimension_semantics=sem, vmem_limit_bytes=vmem_limit),
    )(x2d, scale2, shift2)


def _layer_norm_two_pass(x2d, scale, shift, *, d_chunk=None):
    """Large-D graceful fallback: lane-chunked two-pass (stats, then apply) LayerNorm."""
    tile_target, vmem_limit, row_sem = _tpu_config()
    rows, d = x2d.shape
    if d_chunk is None:
        d_chunk = 2048
    d_chunk = min(d_chunk, d)
    if d_chunk >= 128:
        d_chunk = (d_chunk // 128) * 128
    n_d = pl.cdiv(d, d_chunk)

    tile_rows = _pick_tile_rows(rows, d_chunk, x2d.dtype, tile_target, vmem_limit)
    n_r = pl.cdiv(rows, tile_rows)
    sem = (row_sem if n_r >= 2 else "arbitrary", "arbitrary")
    params = pltpu.CompilerParams(dimension_semantics=sem, vmem_limit_bytes=vmem_limit)

    mean, rstd = pl.pallas_call(
        functools.partial(_ln_stats_kernel, d=d, eps=EPS),
        out_shape=(jax.ShapeDtypeStruct((rows, 1), jnp.float32),
                   jax.ShapeDtypeStruct((rows, 1), jnp.float32)),
        grid_spec=pltpu.PrefetchScalarGridSpec(
            num_scalar_prefetch=0,
            grid=(n_r, n_d),
            in_specs=[pl.BlockSpec((tile_rows, d_chunk), lambda i, k: (i, k))],
            out_specs=(pl.BlockSpec((tile_rows, 1), lambda i, k: (i, 0)),
                       pl.BlockSpec((tile_rows, 1), lambda i, k: (i, 0))),
            scratch_shapes=[pltpu.VMEM((tile_rows, 1), jnp.float32),
                            pltpu.VMEM((tile_rows, 1), jnp.float32)],
        ),
        compiler_params=params,
    )(x2d)

    scale2 = scale.astype(jnp.float32).reshape(1, d)
    shift2 = shift.astype(jnp.float32).reshape(1, d)
    return pl.pallas_call(
        _ln_apply_kernel,
        out_shape=jax.ShapeDtypeStruct((rows, d), x2d.dtype),
        grid_spec=pltpu.PrefetchScalarGridSpec(
            num_scalar_prefetch=0,
            grid=(n_r, n_d),
            in_specs=[
                pl.BlockSpec((tile_rows, d_chunk), lambda i, k: (i, k)),
                pl.BlockSpec((tile_rows, 1), lambda i, k: (i, 0)),
                pl.BlockSpec((tile_rows, 1), lambda i, k: (i, 0)),
                pl.BlockSpec((1, d_chunk), lambda i, k: (0, k)),
                pl.BlockSpec((1, d_chunk), lambda i, k: (0, k)),
            ],
            out_specs=pl.BlockSpec((tile_rows, d_chunk), lambda i, k: (i, k)),
        ),
        compiler_params=params,
    )(x2d, mean, rstd, scale2, shift2)


def layer_norm(x, scale, shift):
    """LayerNorm over the last axis of x. x: (..., D); scale/shift: (D,)."""
    orig_shape = x.shape
    d = orig_shape[-1]
    rows = math.prod(orig_shape[:-1]) if len(orig_shape) > 1 else 1
    x2d = x.reshape(rows, d)
    tile_target, vmem_limit, row_sem = _tpu_config()

    if d < 128:
        out2d = _layer_norm_packed(x2d, scale, shift, tile_target, vmem_limit, row_sem)
    else:
        itemsize = jnp.dtype(x.dtype).itemsize
        min_step = _sublane(x.dtype) * d * (4 * itemsize + 4 * 4)
        if min_step > vmem_limit - (4 << 20):
            out2d = _layer_norm_two_pass(x2d, scale, shift)      # very large D: degrade gracefully
        else:
            out2d = _layer_norm_plain(x2d, scale, shift, tile_target, vmem_limit, row_sem)
    return out2d.reshape(orig_shape)


def _ref_layer_norm(x, scale, shift):
    x32 = x.astype(jnp.float32)
    mean = jnp.mean(x32, axis=-1, keepdims=True)
    var = jnp.mean((x32 - mean) ** 2, axis=-1, keepdims=True)
    return scale * ((x32 - mean) / jnp.sqrt(var + EPS)) + shift


if __name__ == "__main__":
    key = jax.random.PRNGKey(0)
    k1, k2, k3, k4, k5 = jax.random.split(key, 5)

    # 1) Module-sized case: packed lane-dense path (D=32 | 128, rows % G == 0).
    batch, seq, emb_dim = 2, 8, 32
    x = jax.random.normal(k1, (batch, seq, emb_dim), dtype=jnp.float32)
    scale = jnp.ones((emb_dim,), jnp.float32)     # LayerNorm init: scale=1, shift=0
    shift = jnp.zeros((emb_dim,), jnp.float32)
    y = layer_norm(x, scale, shift)
    jax.block_until_ready(y)
    assert jnp.allclose(y, _ref_layer_norm(x, scale, shift), atol=1e-4, rtol=1e-4)

    # 2) D=40 (not a divisor of 128) and ragged row count -> padded packed path.
    x2 = jax.random.normal(k2, (3, 5, 40), dtype=jnp.float32)
    s2 = jnp.full((40,), 1.5, jnp.float32)
    b2 = jnp.full((40,), 0.25, jnp.float32)
    y2 = layer_norm(x2, s2, b2)
    jax.block_until_ready(y2)
    assert jnp.allclose(y2, _ref_layer_norm(x2, s2, b2), atol=1e-4, rtol=1e-4)

    # 3) Wide-feature plain path (D=256) with non-trivial parameters.
    x3 = jax.random.normal(k3, (4, 8, 256), dtype=jnp.float32)
    s3 = jax.random.normal(k4, (256,), dtype=jnp.float32)
    b3 = jax.random.normal(k5, (256,), dtype=jnp.float32)
    y3 = layer_norm(x3, s3, b3)
    jax.block_until_ready(y3)
    assert jnp.allclose(y3, _ref_layer_norm(x3, s3, b3), atol=1e-4, rtol=1e-4)

    # 4) bf16 input through the packed path (native-dtype MXU ingest).
    x4 = jax.random.normal(k1, (16, 64), dtype=jnp.float32).astype(jnp.bfloat16)
    s4 = jnp.ones((64,), jnp.float32)
    b4 = jnp.zeros((64,), jnp.float32)
    y4 = layer_norm(x4, s4, b4)
    jax.block_until_ready(y4)
    assert jnp.allclose(y4.astype(jnp.float32), _ref_layer_norm(x4, s4, b4),
                        atol=5e-2, rtol=5e-2)

    # 5) Exercise the large-D two-pass fallback directly at a small, chunked size.
    x5 = jax.random.normal(k2, (16, 512), dtype=jnp.float32)
    s5 = jnp.full((512,), 0.5, jnp.float32)
    b5 = jnp.full((512,), -1.0, jnp.float32)
    y5 = _layer_norm_two_pass(x5, s5, b5, d_chunk=128)
    jax.block_until_ready(y5)
    assert jnp.allclose(y5, _ref_layer_norm(x5, s5, b5), atol=1e-3, rtol=1e-3)

    print("KERNEL_OK")
</pallas_src>

<mosaic_0001>
module attributes {stable_mosaic.version = 11 : i64} {
  func.func @_ln_packed_kernel(%arg0: i32, %arg1: memref<4x128xf32, #tpu.memory_space<vmem>>, %arg2: memref<128x128xf32, #tpu.memory_space<vmem>>, %arg3: memref<128x4xf32, #tpu.memory_space<vmem>>, %arg4: memref<4x128xf32, #tpu.memory_space<vmem>>, %arg5: memref<1x128xf32, #tpu.memory_space<vmem>>, %arg6: memref<4x128xf32, #tpu.memory_space<vmem>>) attributes {dimension_semantics = [#tpu.dimension_semantics<arbitrary>], iteration_bounds = array<i64: 1>, scalar_prefetch = 0 : i64, scratch_operands = 0 : i64, tpu.core_type = #tpu.core_type<tc>, window_params = [{transform_indices = @transform_0, window_bounds = array<i64: 4, 128>}, {pipeline_mode = #tpu.pipeline_mode<synchronous>, transform_indices = @transform_1, window_bounds = array<i64: 128, 128>}, {pipeline_mode = #tpu.pipeline_mode<synchronous>, transform_indices = @transform_2, window_bounds = array<i64: 128, 4>}, {pipeline_mode = #tpu.pipeline_mode<synchronous>, transform_indices = @transform_3, window_bounds = array<i64: 4, 128>}, {pipeline_mode = #tpu.pipeline_mode<synchronous>, transform_indices = @transform_4, window_bounds = array<i64: 1, 128>}, {transform_indices = @transform_5, window_bounds = array<i64: 4, 128>}]} {
    %c0 = arith.constant 0 : index
    %c0_0 = arith.constant 0 : index
    %0 = vector.load %arg1[%c0, %c0_0] : memref<4x128xf32, #tpu.memory_space<vmem>>, vector<4x128xf32>
    %c0_1 = arith.constant 0 : index
    %c0_2 = arith.constant 0 : index
    %1 = vector.load %arg2[%c0_1, %c0_2] : memref<128x128xf32, #tpu.memory_space<vmem>>, vector<128x128xf32>
    %cst = arith.constant dense<0.000000e+00> : vector<4x128xf32>
    %2 = tpu.matmul %0, %1, %cst {dimension_numbers = #tpu.dot_dimension_numbers<[1], [0], [0], [1], [0, 0, 1, 1], [], []>} : vector<4x128xf32>, vector<128x128xf32>, vector<4x128xf32> -> vector<4x128xf32>
    %cst_3 = arith.constant 3.125000e-02 : f32
    %3 = vector.broadcast %cst_3 : f32 to vector<4x128xf32>
    %4 = arith.mulf %2, %3 : vector<4x128xf32>
    %5 = arith.subf %0, %4 : vector<4x128xf32>
    %6 = arith.mulf %5, %5 : vector<4x128xf32>
    %c0_4 = arith.constant 0 : index
    %c0_5 = arith.constant 0 : index
    %7 = vector.load %arg3[%c0_4, %c0_5] : memref<128x4xf32, #tpu.memory_space<vmem>>, vector<128x4xf32>
    %cst_6 = arith.constant dense<0.000000e+00> : vector<4x4xf32>
    %8 = tpu.matmul %6, %7, %cst_6 {dimension_numbers = #tpu.dot_dimension_numbers<[1], [0], [0], [1], [0, 0, 1, 1], [], []>} : vector<4x128xf32>, vector<128x4xf32>, vector<4x4xf32> -> vector<4x4xf32>
    %cst_7 = arith.constant 3.125000e-02 : f32
    %9 = vector.broadcast %cst_7 : f32 to vector<4x4xf32>
    %10 = arith.mulf %8, %9 : vector<4x4xf32>
    %cst_8 = arith.constant 9.99999974E-6 : f32
    %11 = vector.broadcast %cst_8 : f32 to vector<4x4xf32>
    %12 = arith.addf %10, %11 : vector<4x4xf32>
    %13 = math.rsqrt %12 : vector<4x4xf32>
    %c0_9 = arith.constant 0 : index
    %c0_10 = arith.constant 0 : index
    %14 = vector.load %arg4[%c0_9, %c0_10] : memref<4x128xf32, #tpu.memory_space<vmem>>, vector<4x128xf32>
    %cst_11 = arith.constant dense<0.000000e+00> : vector<4x128xf32>
    %15 = tpu.matmul %13, %14, %cst_11 {dimension_numbers = #tpu.dot_dimension_numbers<[1], [0], [0], [1], [0, 0, 1, 1], [], []>} : vector<4x4xf32>, vector<4x128xf32>, vector<4x128xf32> -> vector<4x128xf32>
    %16 = arith.mulf %5, %15 : vector<4x128xf32>
    %c0_12 = arith.constant 0 : index
    %c0_13 = arith.constant 0 : index
    %17 = vector.load %arg5[%c0_12, %c0_13] : memref<1x128xf32, #tpu.memory_space<vmem>>, vector<1x128xf32>
    %18 = vector.broadcast %17 : vector<1x128xf32> to vector<4x128xf32>
    %19 = arith.addf %16, %18 : vector<4x128xf32>
    %c0_14 = arith.constant 0 : index
    %c0_15 = arith.constant 0 : index
    %20 = vector.load %arg6[%c0_14, %c0_15] : memref<4x128xf32, #tpu.memory_space<vmem>>, vector<4x128xf32>
    tpu.vector_store %arg6[%c0_14, %c0_15], %19 {strides = array<i32>} : memref<4x128xf32, #tpu.memory_space<vmem>>, vector<4x128xf32>,
    return
  }
  func.func @transform_0(%arg0: i32) -> (i32, i32) {
    %c0_i32 = arith.constant 0 : i32
    %c0_i32_0 = arith.constant 0 : i32
    return %arg0, %c0_i32 : i32, i32
  }
  func.func @transform_1(%arg0: i32) -> (i32, i32) {
    %c0_i32 = arith.constant 0 : i32
    %c0_i32_0 = arith.constant 0 : i32
    %c0_i32_1 = arith.constant 0 : i32
    return %c0_i32, %c0_i32_0 : i32, i32
  }
  func.func @transform_2(%arg0: i32) -> (i32, i32) {
    %c0_i32 = arith.constant 0 : i32
    %c0_i32_0 = arith.constant 0 : i32
    %c0_i32_1 = arith.constant 0 : i32
    return %c0_i32, %c0_i32_0 : i32, i32
  }
  func.func @transform_3(%arg0: i32) -> (i32, i32) {
    %c0_i32 = arith.constant 0 : i32
    %c0_i32_0 = arith.constant 0 : i32
    %c0_i32_1 = arith.constant 0 : i32
    return %c0_i32, %c0_i32_0 : i32, i32
  }
  func.func @transform_4(%arg0: i32) -> (i32, i32) {
    %c0_i32 = arith.constant 0 : i32
    %c0_i32_0 = arith.constant 0 : i32
    %c0_i32_1 = arith.constant 0 : i32
    return %c0_i32, %c0_i32_0 : i32, i32
  }
  func.func @transform_5(%arg0: i32) -> (i32, i32) {
    %c0_i32 = arith.constant 0 : i32
    %c0_i32_0 = arith.constant 0 : i32
    return %arg0, %c0_i32 : i32, i32
  }
}

</mosaic_0001>

<llo_original>
// kernel: tpu_custom_call.1
$region0: #{tpu_custom_call.1}
  #allocation0 [shape = 'u32[]', space=smem, size = 0x4, offset = 0x4, fixed_abs, tag = 'smem constant byte address 0x4 - core index']
  #allocation1 [shape = 'u32[72,128]{1,0:T(1,128)}', space=vmem, size = 0x9000, scoped, tag = 'internal scratch']
  %s0 = inlined_call_operand.vmem [shape: f32[4,128], index: 0, kind: input, shape index: {}]
  %s1 = inlined_call_operand.vmem [shape: f32[128,128], index: 1, kind: input, shape index: {}]
  %s2 = inlined_call_operand.vmem [shape: f32[128,4], index: 2, kind: input, shape index: {}]
  %s3 = inlined_call_operand.hbm [shape: f32[4,128], index: 3, kind: input, shape index: {}]
  %s4 = inlined_call_operand.vmem [shape: f32[1,128], index: 4, kind: input, shape index: {}]
  %s5 = inlined_call_operand.hbm [shape: f32[4,128], index: 5, kind: output, shape index: {}]
  %s6 = sld [smem:[#allocation0]]
  $region34: #{tpu_custom_call.1} parent=0
    _
  %s8 = ssub.s32 1, %s6
  %s9 = scalar_select 0, %s8, %s6
  $region1: #{tpu_custom_call.1} parent=0
    #allocation2 [shape = 'u8[2048]{0}', space=vmem, size = 0x800, scoped, tag = 'input window, operand 3, single buffered']
    #allocation3 [shape = 's32[1]{0}', space=sflag, size = 0x4, scoped, tag = 'scoped memory for tpu_custom_call.1']
    #allocation4 [shape = 's32[1]{0}', space=sflag, size = 0x4, scoped, tag = 'scoped memory for tpu_custom_call.1']
    #allocation5 [shape = 'u8[2048]{0}', space=vmem, size = 0x800, scoped, tag = 'output window, operand 0, single buffered']
    %10 = vsyncpa [#allocation3], 0
    %11 = vsyncpa [#allocation4], 0
    // Predicated region
    $region2: #{tpu_custom_call.1} parent=1 // pred_check
      _
    $region3: #{tpu_custom_call.1} parent=1 // pred_check_branch
      %13 = sbr.rel (0) target = $region5
    $region4: #{tpu_custom_call.1} parent=1 // pred_region
      _
    $region5: #{tpu_custom_call.1} parent=1 // pred_fallthru
      _
    // Predicated region
    $region6: #{tpu_custom_call.1} parent=1 // pred_check
      _
    $region7: #{tpu_custom_call.1} parent=1 // pred_check_branch
      %15 = sbr.rel (0) target = $region9
    $region8: #{tpu_custom_call.1} parent=1 // pred_region
      _
    $region9: #{tpu_custom_call.1} parent=1 // pred_fallthru
      _
    // Predicated region
    $region10: #{tpu_custom_call.1} parent=1 // pred_check
      _
    $region11: #{tpu_custom_call.1} parent=1 // pred_check_branch
      %17 = sbr.rel (0) target = $region13
    $region12: #{tpu_custom_call.1} parent=1 // pred_region
      _
    $region13: #{tpu_custom_call.1} parent=1 // pred_fallthru
      _
    // Predicated region
    $region14: #{tpu_custom_call.1} parent=1 // pred_check
      _
    $region15: #{tpu_custom_call.1} parent=1 // pred_check_branch
      %19 = sbr.rel (0) target = $region17
    $region16: #{tpu_custom_call.1} parent=1 // pred_region
      %21 = vsyncadd [#allocation3], 0
      %s23 = sshll.u32 %s3, 4
      %s24 = int_to_ptr.hbm [resolvable:$true] %s23
      %s25 = sshll.u32 [#allocation2], 4
      %s26 = int_to_ptr.vmem [resolvable:$true] %s25
      %28 = dma.hbm_to_vmem [thread:$0]  %s24, 64, %s26, [#allocation3]
    $region17: #{tpu_custom_call.1} parent=1 // pred_fallthru
      _
    // Predicated region
    $region18: #{tpu_custom_call.1} parent=1 // pred_check
      _
    $region19: #{tpu_custom_call.1} parent=1 // pred_check_branch
      %30 = sbr.rel (0) target = $region21
    $region20: #{tpu_custom_call.1} parent=1 // pred_region
      _
    $region21: #{tpu_custom_call.1} parent=1 // pred_fallthru
      _
    // Predicated region
    $region22: #{tpu_custom_call.1} parent=1 // pred_check
      _
    $region23: #{tpu_custom_call.1} parent=1 // pred_check_branch
      %32 = sbr.rel (0) target = $region25
    $region24: #{tpu_custom_call.1} parent=1 // pred_region
      %34 = dma.done [#allocation3], 64
    $region25: #{tpu_custom_call.1} parent=1 // pred_fallthru
      _
    %v35 = vld [vmem:[%s0] sm:$0xf]
    %v36 = vld [vmem:[%s1] sm:$0xff]
    %v37 = vld [vmem:[%s1 + $0x8] sm:$0xff]
    %v38 = vld [vmem:[%s1 + $0x10] sm:$0xff]
    %v39 = vld [vmem:[%s1 + $0x18] sm:$0xff]
    %v40 = vld [vmem:[%s1 + $0x20] sm:$0xff]
    %v41 = vld [vmem:[%s1 + $0x28] sm:$0xff]
    %v42 = vld [vmem:[%s1 + $0x30] sm:$0xff]
    %v43 = vld [vmem:[%s1 + $0x38] sm:$0xff]
    %v44 = vld [vmem:[%s1 + $0x40] sm:$0xff]
    %v45 = vld [vmem:[%s1 + $0x48] sm:$0xff]
    %v46 = vld [vmem:[%s1 + $0x50] sm:$0xff]
    %v47 = vld [vmem:[%s1 + $0x58] sm:$0xff]
    %v48 = vld [vmem:[%s1 + $0x60] sm:$0xff]
    %v49 = vld [vmem:[%s1 + $0x68] sm:$0xff]
    %v50 = vld [vmem:[%s1 + $0x70] sm:$0xff]
    %v51 = vld [vmem:[%s1 + $0x78] sm:$0xff]
    %52 = vmatpush.msra.mxu0 %v51
    %53 = vmatpush.msra.mxu0 %v50
    %54 = vmatpush.msra.mxu0 %v49
    %55 = vmatpush.msra.mxu0 %v48
    %56 = vmatpush.msra.mxu0 %v47
    %57 = vmatpush.msra.mxu0 %v46
    %58 = vmatpush.msra.mxu0 %v45
    %59 = vmatpush.msra.mxu0 %v44
    %60 = vmatpush.msra.mxu0 %v43
    %61 = vmatpush.msra.mxu0 %v42
    %62 = vmatpush.msra.mxu0 %v41
    %63 = vmatpush.msra.mxu0 %v40
    %64 = vmatpush.msra.mxu0 %v39
    %65 = vmatpush.msra.mxu0 %v38
    %66 = vmatpush.msra.mxu0 %v37
    %67 = vmatpush.msra.mxu0 %v36
    %68 = vmatmul.f32.gmra.mxu0 %v35
    %v69 = vpop.f32.mrf.mxu0
    %v70 = vadd.f32 0.0, %v69
    %71 = vdwg.mxu0
    %v72 = vmul.f32 %v70, 0.03125
    %v73 = vsub.f32 %v35, %v72
    %v74 = vmul.f32 %v73, %v73
    %v75 = vld [vmem:[%s2] sm:$0xff]
    %v76 = vld [vmem:[%s2 + $0x8] sm:$0xff]
    %v77 = vld [vmem:[%s2 + $0x10] sm:$0xff]
    %v78 = vld [vmem:[%s2 + $0x18] sm:$0xff]
    %v79 = vld [vmem:[%s2 + $0x20] sm:$0xff]
    %v80 = vld [vmem:[%s2 + $0x28] sm:$0xff]
    %v81 = vld [vmem:[%s2 + $0x30] sm:$0xff]
    %v82 = vld [vmem:[%s2 + $0x38] sm:$0xff]
    %v83 = vld [vmem:[%s2 + $0x40] sm:$0xff]
    %v84 = vld [vmem:[%s2 + $0x48] sm:$0xff]
    %v85 = vld [vmem:[%s2 + $0x50] sm:$0xff]
    %v86 = vld [vmem:[%s2 + $0x58] sm:$0xff]
    %v87 = vld [vmem:[%s2 + $0x60] sm:$0xff]
    %v88 = vld [vmem:[%s2 + $0x68] sm:$0xff]
    %v89 = vld [vmem:[%s2 + $0x70] sm:$0xff]
    %v90 = vld [vmem:[%s2 + $0x78] sm:$0xff]
    %91 = vmatpush.msra.mxu0 %v90
    %92 = vmatpush.msra.mxu0 %v89
    %93 = vmatpush.msra.mxu0 %v88
    %94 = vmatpush.msra.mxu0 %v87
    %95 = vmatpush.msra.mxu0 %v86
    %96 = vmatpush.msra.mxu0 %v85
    %97 = vmatpush.msra.mxu0 %v84
    %98 = vmatpush.msra.mxu0 %v83
    %99 = vmatpush.msra.mxu0 %v82
    %100 = vmatpush.msra.mxu0 %v81
    %101 = vmatpush.msra.mxu0 %v80
    %102 = vmatpush.msra.mxu0 %v79
    %103 = vmatpush.msra.mxu0 %v78
    %104 = vmatpush.msra.mxu0 %v77
    %105 = vmatpush.msra.mxu0 %v76
    %106 = vmatpush.msra.mxu0 %v75
    %107 = vmatmul.f32.gmra.mxu0 %v74
    %v108 = vpop.f32.mrf.mxu0
    %v109 = vadd.f32 0.0, %v108
    %110 = vdwg.mxu0
    %v111 = vmul.f32 %v109, 0.03125
    %v112 = vadd.f32 %v111, 1e-05
    %v113 = vrsqrt.pop %v112
    %v114 = vmul.f32 %v113, %v112
    %v115 = vmul.f32 %v114, %v113
    %v116 = vmul.f32 0.5, %v115
    %v117 = vsub.f32 1.5, %v116
    %v118 = vmul.f32 %v113, %v117
    %vm119 = vweird.f32 %v112
    %vm120 = vweird.f32 %v113
    %vm121 = vmor %vm119, %vm120
    %v122 = vsel %vm121, %v113, %v118
    %v123 = vld [vmem:[#allocation2] sm:$0xf]
    %vm124 = vcmask 31744
    %v126 = vsel %vm124, %v122, 0
    %vm128 = vcmask 1043456
    %v130 = vsel %vm128, %v123, 0
    %132 = vmatpush.msra.mxu0 0.0
    %133 = vmatpush.msra.mxu0 0.0
    %134 = vmatpush.msra.mxu0 0.0
    %135 = vmatpush.msra.mxu0 0.0
    %136 = vmatpush.msra.mxu0 0.0
    %137 = vmatpush.msra.mxu0 0.0
    %138 = vmatpush.msra.mxu0 0.0
    %139 = vmatpush.msra.mxu0 0.0
    %140 = vmatpush.msra.mxu0 0.0
    %141 = vmatpush.msra.mxu0 0.0
    %142 = vmatpush.msra.mxu0 0.0
    %143 = vmatpush.msra.mxu0 0.0
    %144 = vmatpush.msra.mxu0 0.0
    %145 = vmatpush.msra.mxu0 0.0
    %146 = vmatpush.msra.mxu0 0.0
    %147 = vmatpush.msra.mxu0 %v130
    %148 = vmatmul.f32.gmra.mxu0 %v126
    %v149 = vpop.f32.mrf.mxu0
    %v150 = vadd.f32 0.0, %v149
    %151 = vdwg.mxu0
    %v152 = vmul.f32 %v73, %v150
    %v153 = vld [vmem:[%s4] sm:$0x1]
    %v155 = vperm.slane %v153, 0
    %v157 = vadd.f32 %v152, %v155
    %158 = vst [vmem:[#allocation5] sm:$0xf] %v157
    // Predicated region
    $region26: #{tpu_custom_call.1} parent=1 // pred_check
      _
    $region27: #{tpu_custom_call.1} parent=1 // pred_check_branch
      %160 = sbr.rel (0) target = $region29
    $region28: #{tpu_custom_call.1} parent=1 // pred_region
      %162 = vsyncadd [#allocation4], 0
      %s164 = sshll.u32 [#allocation5], 4
      %s165 = int_to_ptr.vmem [resolvable:$true] %s164
      %s166 = sshll.u32 %s5, 4
      %s167 = int_to_ptr.hbm [resolvable:$true] %s166
      %169 = dma.vmem_to_hbm [thread:$0]  %s165, 64, %s167, [#allocation4]
    $region29: #{tpu_custom_call.1} parent=1 // pred_fallthru
      _
    // Predicated region
    $region30: #{tpu_custom_call.1} parent=1 // pred_check
      _
    $region31: #{tpu_custom_call.1} parent=1 // pred_check_branch
      %171 = sbr.rel (0) target = $region33
    $region32: #{tpu_custom_call.1} parent=1 // pred_region
      %173 = dma.done [#allocation4], 64
    $region33: #{tpu_custom_call.1} parent=1 // pred_fallthru
      _
    %174 = vsyncpa [#allocation3], 1
    %175 = vsyncpa [#allocation4], 1

</llo_original>
